<compile_context>
chip_gen: v5e
topology: v5e:2x2
jax: 0.10.0
libtpu: 0.0.40
codegen_flags: <defaults>
</compile_context>

<pallas_src>
import functools

import jax
import jax.numpy as jnp
from jax.experimental import pallas as pl
from jax.experimental.pallas import tpu as pltpu

WINDOW_SIZE = 11
SIGMA = 1.5
C1 = 0.01 ** 2
C2 = 0.03 ** 2


# ---------------------------------------------------------------------------
# Glue: deterministic gaussian window -> 1-D "same"-conv band matrices.
# ---------------------------------------------------------------------------
def _gaussian_1d(window_size: int = WINDOW_SIZE, sigma: float = SIGMA):
    xs = jnp.arange(window_size, dtype=jnp.float32) - (window_size // 2)
    g = jnp.exp(-(xs ** 2) / (2.0 * sigma ** 2))
    return g / jnp.sum(g)


def _band_matrix(n: int, g):
    # A[i, k] = g[k - i + pad] (zero outside the window / image) -> 1D "same"
    # conv with zero padding, matching F.conv2d(padding=window//2).
    ws = g.shape[0]
    pad = ws // 2
    idx = jnp.arange(n)
    d = idx[None, :] - idx[:, None] + pad
    valid = (d >= 0) & (d < ws)
    return jnp.where(valid, g[jnp.clip(d, 0, ws - 1)], 0.0).astype(jnp.float32)


def _sum2d(v):
    # Full 2-D reduction that stays 2-D: (H, W) -> (1, 1).
    return jnp.sum(jnp.sum(v, axis=1, keepdims=True), axis=0, keepdims=True)


# ---------------------------------------------------------------------------
# Pallas kernel: per grid step, process one (b, c) image and accumulate.
# ---------------------------------------------------------------------------
def _bce_ssim_kernel(x_ref, y_ref, ah_ref, awt_ref, out_ref,
                     rs_ref, cs_ref, bce_acc, ssim_acc, *, inv_total):
    i = pl.program_id(0)

    @pl.when(i == 0)
    def _init():
        bce_acc[...] = jnp.zeros_like(bce_acc)
        ssim_acc[...] = jnp.zeros_like(ssim_acc)

    x = x_ref[...]            # (H, W) predictions in (0, 1) for this image
    y = y_ref[...]            # (H, W) labels (float)
    h, w = x.shape

    # ---- BCE partial sum (nn.BCELoss semantics: log clamped at -100) -------
    log_x = jnp.maximum(jnp.log(x), -100.0)
    log_1mx = jnp.maximum(jnp.log(1.0 - x), -100.0)
    bce_acc[...] += _sum2d(-(y * log_x + (1.0 - y) * log_1mx))

    # ---- SSIM: separable gaussian blur, both passes fused across the five
    #      quantities {x, y, x*x, y*y, x*y} as single MXU matmuls. ----------
    # W-pass: row-stack (5H, W), right-multiply once by AW^T.
    rs_ref[0 * h:1 * h, :] = x
    rs_ref[1 * h:2 * h, :] = y
    rs_ref[2 * h:3 * h, :] = x * x
    rs_ref[3 * h:4 * h, :] = y * y
    rs_ref[4 * h:5 * h, :] = x * y
    t1 = jnp.dot(rs_ref[...], awt_ref[...],
                 preferred_element_type=jnp.float32)            # (5H, W)

    # H-pass: col-restack to (H, 5W), left-multiply once by AH.
    for q in range(5):
        cs_ref[:, q * w:(q + 1) * w] = t1[q * h:(q + 1) * h, :]
    t2 = jnp.dot(ah_ref[...], cs_ref[...],
                 preferred_element_type=jnp.float32)            # (H, 5W)

    mu1 = t2[:, 0 * w:1 * w]
    mu2 = t2[:, 1 * w:2 * w]
    e_xx = t2[:, 2 * w:3 * w]
    e_yy = t2[:, 3 * w:4 * w]
    e_xy = t2[:, 4 * w:5 * w]

    mu1_sq = mu1 * mu1
    mu2_sq = mu2 * mu2
    mu12 = mu1 * mu2
    sigma1_sq = e_xx - mu1_sq
    sigma2_sq = e_yy - mu2_sq
    sigma12 = e_xy - mu12

    num = (2.0 * mu12 + C1) * (2.0 * sigma12 + C2)
    den = (mu1_sq + mu2_sq + C1) * (sigma1_sq + sigma2_sq + C2)
    ssim_acc[...] += _sum2d(num * pl.reciprocal(den, approx=True))

    # ---- finalize on the last image ----------------------------------------
    @pl.when(i == pl.num_programs(0) - 1)
    def _finalize():
        bce_mean = bce_acc[...] * inv_total
        ssim_mean = ssim_acc[...] * inv_total
        out_ref[...] = bce_mean + (1.0 - ssim_mean)


@jax.jit
def bce_ssim(outputs, labels):
    """outputs, labels: (B, C, H, W); returns scalar loss = BCE + (1 - SSIM)."""
    b, c, h, w = outputs.shape
    n = b * c
    x = outputs.astype(jnp.float32).reshape(n, h, w)
    y = labels.astype(jnp.float32).reshape(n, h, w)

    g = _gaussian_1d()
    ah = _band_matrix(h, g)        # left-multiply matrix for the H pass
    awt = _band_matrix(w, g).T     # right-multiply matrix for the W pass

    kernel = functools.partial(_bce_ssim_kernel,
                               inv_total=1.0 / float(n * h * w))

    out = pl.pallas_call(
        kernel,
        out_shape=jax.ShapeDtypeStruct((1, 1), jnp.float32),
        grid=(n,),
        in_specs=[
            pl.BlockSpec((None, h, w), lambda i: (i, 0, 0)),   # x image i
            pl.BlockSpec((None, h, w), lambda i: (i, 0, 0)),   # y image i
            pl.BlockSpec((h, h), lambda i: (0, 0)),            # AH   (resident)
            pl.BlockSpec((w, w), lambda i: (0, 0)),            # AW^T (resident)
        ],
        out_specs=pl.BlockSpec((1, 1), lambda i: (0, 0)),
        scratch_shapes=[
            pltpu.VMEM((5 * h, w), jnp.float32),     # row-stacked W-pass input
            pltpu.VMEM((h, 5 * w), jnp.float32),     # col-stacked H-pass input
            pltpu.VMEM((1, 1), jnp.float32),         # BCE sum accumulator
            pltpu.VMEM((1, 1), jnp.float32),         # SSIM-map sum accumulator
        ],
        compiler_params=pltpu.CompilerParams(
            dimension_semantics=("arbitrary",),
            vmem_limit_bytes=32 * 1024 * 1024,
        ),
    )(x, y, ah, awt)
    return out[0, 0]


# ---------------------------------------------------------------------------
# Pure-JAX reference (XLA conv) to validate the kernel.
# ---------------------------------------------------------------------------
def bce_ssim_reference(outputs, labels):
    x = outputs.astype(jnp.float32)
    y = labels.astype(jnp.float32)
    log_x = jnp.maximum(jnp.log(x), -100.0)
    log_1mx = jnp.maximum(jnp.log(1.0 - x), -100.0)
    bce = jnp.mean(-(y * log_x + (1.0 - y) * log_1mx))

    g = _gaussian_1d()
    w2d = jnp.outer(g, g)
    c = x.shape[1]
    window = jnp.broadcast_to(w2d, (c, 1, WINDOW_SIZE, WINDOW_SIZE))
    pad = WINDOW_SIZE // 2

    def conv(img):
        return jax.lax.conv_general_dilated(
            img, window, (1, 1), [(pad, pad), (pad, pad)],
            dimension_numbers=("NCHW", "OIHW", "NCHW"),
            feature_group_count=c)

    mu1 = conv(x)
    mu2 = conv(y)
    s1 = conv(x * x) - mu1 * mu1
    s2 = conv(y * y) - mu2 * mu2
    s12 = conv(x * y) - mu1 * mu2
    ssim_map = ((2.0 * mu1 * mu2 + C1) * (2.0 * s12 + C2)) / (
        (mu1 * mu1 + mu2 * mu2 + C1) * (s1 + s2 + C2))
    return bce + (1.0 - jnp.mean(ssim_map))


if __name__ == "__main__":
    key = jax.random.PRNGKey(0)
    k1, k2 = jax.random.split(key)
    B, C, H, W = 2, 4, 16, 16
    # Predictions must lie in (0, 1) for BCELoss; labels are binary floats.
    outputs = jax.random.uniform(k1, (B, C, H, W), jnp.float32,
                                 minval=0.01, maxval=0.99)
    labels = (jax.random.uniform(k2, (B, C, H, W)) > 0.5).astype(jnp.float32)

    loss = jax.block_until_ready(bce_ssim(outputs, labels))
    ref = jax.block_until_ready(bce_ssim_reference(outputs, labels))

    assert jnp.isfinite(loss), loss
    # Tolerance accounts for default-precision MXU matmuls (vs HIGHEST before)
    # and the approximate EUP reciprocal, per the performance review.
    assert abs(float(loss) - float(ref)) < 2e-2, (float(loss), float(ref))
    print("KERNEL_OK")
</pallas_src>

<mosaic_0001>
module attributes {stable_mosaic.version = 11 : i64} {
  func.func @_bce_ssim_kernel(%arg0: i32, %arg1: memref<1x16x16xf32, #tpu.memory_space<vmem>>, %arg2: memref<1x16x16xf32, #tpu.memory_space<vmem>>, %arg3: memref<16x16xf32, #tpu.memory_space<vmem>>, %arg4: memref<16x16xf32, #tpu.memory_space<vmem>>, %arg5: memref<1x1xf32, #tpu.memory_space<vmem>>, %arg6: memref<80x16xf32, #tpu.memory_space<vmem>>, %arg7: memref<16x80xf32, #tpu.memory_space<vmem>>, %arg8: memref<1x1xf32, #tpu.memory_space<vmem>>, %arg9: memref<1x1xf32, #tpu.memory_space<vmem>>) attributes {dimension_semantics = [#tpu.dimension_semantics<arbitrary>], iteration_bounds = array<i64: 8>, scalar_prefetch = 0 : i64, scratch_operands = 4 : i64, tpu.core_type = #tpu.core_type<tc>, window_params = [{transform_indices = @transform_0, window_bounds = array<i64: 1, 16, 16>}, {transform_indices = @transform_1, window_bounds = array<i64: 1, 16, 16>}, {pipeline_mode = #tpu.pipeline_mode<synchronous>, transform_indices = @transform_2, window_bounds = array<i64: 16, 16>}, {pipeline_mode = #tpu.pipeline_mode<synchronous>, transform_indices = @transform_3, window_bounds = array<i64: 16, 16>}, {pipeline_mode = #tpu.pipeline_mode<synchronous>, transform_indices = @transform_4, window_bounds = array<i64: 1, 1>}]} {
    %c0_i32 = arith.constant 0 : i32
    %0 = arith.cmpi eq, %arg0, %c0_i32 : i32
    %1 = arith.extui %0 : i1 to i32
    %c0_i32_0 = arith.constant 0 : i32
    %2 = arith.cmpi ne, %1, %c0_i32_0 : i32
    scf.if %2 {
      %cst_55 = arith.constant 0.000000e+00 : f32
      %92 = vector.broadcast %cst_55 : f32 to vector<1x1xf32>
      %c0_56 = arith.constant 0 : index
      %c0_57 = arith.constant 0 : index
      %93 = vector.load %arg8[%c0_56, %c0_57] : memref<1x1xf32, #tpu.memory_space<vmem>>, vector<1x1xf32>
      tpu.vector_store %arg8[%c0_56, %c0_57], %92 {strides = array<i32>} : memref<1x1xf32, #tpu.memory_space<vmem>>, vector<1x1xf32>,
      %cst_58 = arith.constant 0.000000e+00 : f32
      %94 = vector.broadcast %cst_58 : f32 to vector<1x1xf32>
      %c0_59 = arith.constant 0 : index
      %c0_60 = arith.constant 0 : index
      %95 = vector.load %arg9[%c0_59, %c0_60] : memref<1x1xf32, #tpu.memory_space<vmem>>, vector<1x1xf32>
      tpu.vector_store %arg9[%c0_59, %c0_60], %94 {strides = array<i32>} : memref<1x1xf32, #tpu.memory_space<vmem>>, vector<1x1xf32>,
    } else {
    }
    %c0 = arith.constant 0 : index
    %c0_1 = arith.constant 0 : index
    %c0_2 = arith.constant 0 : index
    %3 = vector.load %arg1[%c0, %c0_1, %c0_2] : memref<1x16x16xf32, #tpu.memory_space<vmem>>, vector<1x16x16xf32>
    %4 = vector.shape_cast %3 : vector<1x16x16xf32> to vector<16x16xf32>
    %c0_3 = arith.constant 0 : index
    %c0_4 = arith.constant 0 : index
    %c0_5 = arith.constant 0 : index
    %5 = vector.load %arg2[%c0_3, %c0_4, %c0_5] : memref<1x16x16xf32, #tpu.memory_space<vmem>>, vector<1x16x16xf32>
    %6 = vector.shape_cast %5 : vector<1x16x16xf32> to vector<16x16xf32>
    %7 = math.log %4 : vector<16x16xf32>
    %cst = arith.constant -1.000000e+02 : f32
    %8 = vector.broadcast %cst : f32 to vector<16x16xf32>
    %9 = arith.maximumf %7, %8 : vector<16x16xf32>
    %cst_6 = arith.constant 1.000000e+00 : f32
    %10 = vector.broadcast %cst_6 : f32 to vector<16x16xf32>
    %11 = arith.subf %10, %4 : vector<16x16xf32>
    %12 = math.log %11 : vector<16x16xf32>
    %cst_7 = arith.constant -1.000000e+02 : f32
    %13 = vector.broadcast %cst_7 : f32 to vector<16x16xf32>
    %14 = arith.maximumf %12, %13 : vector<16x16xf32>
    %c0_8 = arith.constant 0 : index
    %c0_9 = arith.constant 0 : index
    %15 = vector.load %arg8[%c0_8, %c0_9] : memref<1x1xf32, #tpu.memory_space<vmem>>, vector<1x1xf32>
    %16 = arith.mulf %6, %9 : vector<16x16xf32>
    %cst_10 = arith.constant 1.000000e+00 : f32
    %17 = vector.broadcast %cst_10 : f32 to vector<16x16xf32>
    %18 = arith.subf %17, %6 : vector<16x16xf32>
    %19 = arith.mulf %18, %14 : vector<16x16xf32>
    %20 = arith.addf %16, %19 : vector<16x16xf32>
    %cst_11 = arith.constant 0.000000e+00 : f32
    %21 = vector.broadcast %cst_11 : f32 to vector<16x16xf32>
    %22 = arith.subf %21, %20 : vector<16x16xf32>
    %cst_12 = arith.constant dense<0.000000e+00> : vector<16xf32>
    %23 = vector.multi_reduction <add>, %22, %cst_12 [1] : vector<16x16xf32> to vector<16xf32>
    %24 = vector.shape_cast %23 : vector<16xf32> to vector<16x1xf32>
    %cst_13 = arith.constant dense<0.000000e+00> : vector<1xf32>
    %25 = vector.multi_reduction <add>, %24, %cst_13 [0] : vector<16x1xf32> to vector<1xf32>
    %26 = vector.shape_cast %25 : vector<1xf32> to vector<1x1xf32>
    %27 = arith.addf %15, %26 : vector<1x1xf32>
    %c0_14 = arith.constant 0 : index
    %c0_15 = arith.constant 0 : index
    %28 = vector.load %arg8[%c0_14, %c0_15] : memref<1x1xf32, #tpu.memory_space<vmem>>, vector<1x1xf32>
    tpu.vector_store %arg8[%c0_14, %c0_15], %27 {strides = array<i32>} : memref<1x1xf32, #tpu.memory_space<vmem>>, vector<1x1xf32>,
    %c0_16 = arith.constant 0 : index
    %c0_17 = arith.constant 0 : index
    %29 = vector.load %arg6[%c0_16, %c0_17] : memref<80x16xf32, #tpu.memory_space<vmem>>, vector<16x16xf32>
    tpu.vector_store %arg6[%c0_16, %c0_17], %4 {strides = array<i32>} : memref<80x16xf32, #tpu.memory_space<vmem>>, vector<16x16xf32>,
    %c16 = arith.constant 16 : index
    %c0_18 = arith.constant 0 : index
    %30 = vector.load %arg6[%c16, %c0_18] : memref<80x16xf32, #tpu.memory_space<vmem>>, vector<16x16xf32>
    tpu.vector_store %arg6[%c16, %c0_18], %6 {strides = array<i32>} : memref<80x16xf32, #tpu.memory_space<vmem>>, vector<16x16xf32>,
    %31 = arith.mulf %4, %4 : vector<16x16xf32>
    %c32 = arith.constant 32 : index
    %c0_19 = arith.constant 0 : index
    %32 = vector.load %arg6[%c32, %c0_19] : memref<80x16xf32, #tpu.memory_space<vmem>>, vector<16x16xf32>
    tpu.vector_store %arg6[%c32, %c0_19], %31 {strides = array<i32>} : memref<80x16xf32, #tpu.memory_space<vmem>>, vector<16x16xf32>,
    %33 = arith.mulf %6, %6 : vector<16x16xf32>
    %c48 = arith.constant 48 : index
    %c0_20 = arith.constant 0 : index
    %34 = vector.load %arg6[%c48, %c0_20] : memref<80x16xf32, #tpu.memory_space<vmem>>, vector<16x16xf32>
    tpu.vector_store %arg6[%c48, %c0_20], %33 {strides = array<i32>} : memref<80x16xf32, #tpu.memory_space<vmem>>, vector<16x16xf32>,
    %35 = arith.mulf %4, %6 : vector<16x16xf32>
    %c64 = arith.constant 64 : index
    %c0_21 = arith.constant 0 : index
    %36 = vector.load %arg6[%c64, %c0_21] : memref<80x16xf32, #tpu.memory_space<vmem>>, vector<16x16xf32>
    tpu.vector_store %arg6[%c64, %c0_21], %35 {strides = array<i32>} : memref<80x16xf32, #tpu.memory_space<vmem>>, vector<16x16xf32>,
    %c0_22 = arith.constant 0 : index
    %c0_23 = arith.constant 0 : index
    %37 = vector.load %arg6[%c0_22, %c0_23] : memref<80x16xf32, #tpu.memory_space<vmem>>, vector<80x16xf32>
    %c0_24 = arith.constant 0 : index
    %c0_25 = arith.constant 0 : index
    %38 = vector.load %arg4[%c0_24, %c0_25] : memref<16x16xf32, #tpu.memory_space<vmem>>, vector<16x16xf32>
    %cst_26 = arith.constant dense<0.000000e+00> : vector<80x16xf32>
    %39 = tpu.matmul %37, %38, %cst_26 {dimension_numbers = #tpu.dot_dimension_numbers<[1], [0], [0], [1], [0, 0, 1, 1], [], []>} : vector<80x16xf32>, vector<16x16xf32>, vector<80x16xf32> -> vector<80x16xf32>
    %40 = vector.extract_strided_slice %39 {offsets = [0, 0], sizes = [16, 16], strides = [1, 1]} : vector<80x16xf32> to vector<16x16xf32>
    %c0_27 = arith.constant 0 : index
    %c0_28 = arith.constant 0 : index
    %41 = vector.load %arg7[%c0_27, %c0_28] : memref<16x80xf32, #tpu.memory_space<vmem>>, vector<16x16xf32>
    tpu.vector_store %arg7[%c0_27, %c0_28], %40 {strides = array<i32>} : memref<16x80xf32, #tpu.memory_space<vmem>>, vector<16x16xf32>,
    %42 = vector.extract_strided_slice %39 {offsets = [16, 0], sizes = [16, 16], strides = [1, 1]} : vector<80x16xf32> to vector<16x16xf32>
    %c0_29 = arith.constant 0 : index
    %c16_30 = arith.constant 16 : index
    %43 = vector.load %arg7[%c0_29, %c16_30] : memref<16x80xf32, #tpu.memory_space<vmem>>, vector<16x16xf32>
    tpu.vector_store %arg7[%c0_29, %c16_30], %42 {strides = array<i32>} : memref<16x80xf32, #tpu.memory_space<vmem>>, vector<16x16xf32>,
    %44 = vector.extract_strided_slice %39 {offsets = [32, 0], sizes = [16, 16], strides = [1, 1]} : vector<80x16xf32> to vector<16x16xf32>
    %c0_31 = arith.constant 0 : index
    %c32_32 = arith.constant 32 : index
    %45 = vector.load %arg7[%c0_31, %c32_32] : memref<16x80xf32, #tpu.memory_space<vmem>>, vector<16x16xf32>
    tpu.vector_store %arg7[%c0_31, %c32_32], %44 {strides = array<i32>} : memref<16x80xf32, #tpu.memory_space<vmem>>, vector<16x16xf32>,
    %46 = vector.extract_strided_slice %39 {offsets = [48, 0], sizes = [16, 16], strides = [1, 1]} : vector<80x16xf32> to vector<16x16xf32>
    %c0_33 = arith.constant 0 : index
    %c48_34 = arith.constant 48 : index
    %47 = vector.load %arg7[%c0_33, %c48_34] : memref<16x80xf32, #tpu.memory_space<vmem>>, vector<16x16xf32>
    tpu.vector_store %arg7[%c0_33, %c48_34], %46 {strides = array<i32>} : memref<16x80xf32, #tpu.memory_space<vmem>>, vector<16x16xf32>,
    %48 = vector.extract_strided_slice %39 {offsets = [64, 0], sizes = [16, 16], strides = [1, 1]} : vector<80x16xf32> to vector<16x16xf32>
    %c0_35 = arith.constant 0 : index
    %c64_36 = arith.constant 64 : index
    %49 = vector.load %arg7[%c0_35, %c64_36] : memref<16x80xf32, #tpu.memory_space<vmem>>, vector<16x16xf32>
    tpu.vector_store %arg7[%c0_35, %c64_36], %48 {strides = array<i32>} : memref<16x80xf32, #tpu.memory_space<vmem>>, vector<16x16xf32>,
    %c0_37 = arith.constant 0 : index
    %c0_38 = arith.constant 0 : index
    %50 = vector.load %arg3[%c0_37, %c0_38] : memref<16x16xf32, #tpu.memory_space<vmem>>, vector<16x16xf32>
    %c0_39 = arith.constant 0 : index
    %c0_40 = arith.constant 0 : index
    %51 = vector.load %arg7[%c0_39, %c0_40] : memref<16x80xf32, #tpu.memory_space<vmem>>, vector<16x80xf32>
    %cst_41 = arith.constant dense<0.000000e+00> : vector<16x80xf32>
    %52 = tpu.matmul %50, %51, %cst_41 {dimension_numbers = #tpu.dot_dimension_numbers<[1], [0], [0], [1], [0, 0, 1, 1], [], []>} : vector<16x16xf32>, vector<16x80xf32>, vector<16x80xf32> -> vector<16x80xf32>
    %53 = vector.extract_strided_slice %52 {offsets = [0, 0], sizes = [16, 16], strides = [1, 1]} : vector<16x80xf32> to vector<16x16xf32>
    %54 = vector.extract_strided_slice %52 {offsets = [0, 16], sizes = [16, 16], strides = [1, 1]} : vector<16x80xf32> to vector<16x16xf32>
    %55 = vector.extract_strided_slice %52 {offsets = [0, 32], sizes = [16, 16], strides = [1, 1]} : vector<16x80xf32> to vector<16x16xf32>
    %56 = vector.extract_strided_slice %52 {offsets = [0, 48], sizes = [16, 16], strides = [1, 1]} : vector<16x80xf32> to vector<16x16xf32>
    %57 = vector.extract_strided_slice %52 {offsets = [0, 64], sizes = [16, 16], strides = [1, 1]} : vector<16x80xf32> to vector<16x16xf32>
    %58 = arith.mulf %53, %53 : vector<16x16xf32>
    %59 = arith.mulf %54, %54 : vector<16x16xf32>
    %60 = arith.mulf %53, %54 : vector<16x16xf32>
    %61 = arith.subf %55, %58 : vector<16x16xf32>
    %62 = arith.subf %56, %59 : vector<16x16xf32>
    %63 = arith.subf %57, %60 : vector<16x16xf32>
    %cst_42 = arith.constant 2.000000e+00 : f32
    %64 = vector.broadcast %cst_42 : f32 to vector<16x16xf32>
    %65 = arith.mulf %64, %60 : vector<16x16xf32>
    %cst_43 = arith.constant 9.99999974E-5 : f32
    %66 = vector.broadcast %cst_43 : f32 to vector<16x16xf32>
    %67 = arith.addf %65, %66 : vector<16x16xf32>
    %cst_44 = arith.constant 2.000000e+00 : f32
    %68 = vector.broadcast %cst_44 : f32 to vector<16x16xf32>
    %69 = arith.mulf %68, %63 : vector<16x16xf32>
    %cst_45 = arith.constant 8.99999984E-4 : f32
    %70 = vector.broadcast %cst_45 : f32 to vector<16x16xf32>
    %71 = arith.addf %69, %70 : vector<16x16xf32>
    %72 = arith.mulf %67, %71 : vector<16x16xf32>
    %73 = arith.addf %58, %59 : vector<16x16xf32>
    %cst_46 = arith.constant 9.99999974E-5 : f32
    %74 = vector.broadcast %cst_46 : f32 to vector<16x16xf32>
    %75 = arith.addf %73, %74 : vector<16x16xf32>
    %76 = arith.addf %61, %62 : vector<16x16xf32>
    %cst_47 = arith.constant 8.99999984E-4 : f32
    %77 = vector.broadcast %cst_47 : f32 to vector<16x16xf32>
    %78 = arith.addf %76, %77 : vector<16x16xf32>
    %79 = arith.mulf %75, %78 : vector<16x16xf32>
    %c0_48 = arith.constant 0 : index
    %c0_49 = arith.constant 0 : index
    %80 = vector.load %arg9[%c0_48, %c0_49] : memref<1x1xf32, #tpu.memory_space<vmem>>, vector<1x1xf32>
    %81 = tpu.reciprocal %79 {approx = true} : vector<16x16xf32> -> vector<16x16xf32>
    %82 = arith.mulf %72, %81 : vector<16x16xf32>
    %cst_50 = arith.constant dense<0.000000e+00> : vector<16xf32>
    %83 = vector.multi_reduction <add>, %82, %cst_50 [1] : vector<16x16xf32> to vector<16xf32>
    %84 = vector.shape_cast %83 : vector<16xf32> to vector<16x1xf32>
    %cst_51 = arith.constant dense<0.000000e+00> : vector<1xf32>
    %85 = vector.multi_reduction <add>, %84, %cst_51 [0] : vector<16x1xf32> to vector<1xf32>
    %86 = vector.shape_cast %85 : vector<1xf32> to vector<1x1xf32>
    %87 = arith.addf %80, %86 : vector<1x1xf32>
    %c0_52 = arith.constant 0 : index
    %c0_53 = arith.constant 0 : index
    %88 = vector.load %arg9[%c0_52, %c0_53] : memref<1x1xf32, #tpu.memory_space<vmem>>, vector<1x1xf32>
    tpu.vector_store %arg9[%c0_52, %c0_53], %87 {strides = array<i32>} : memref<1x1xf32, #tpu.memory_space<vmem>>, vector<1x1xf32>,
    %c7_i32 = arith.constant 7 : i32
    %89 = arith.cmpi eq, %arg0, %c7_i32 : i32
    %90 = arith.extui %89 : i1 to i32
    %c0_i32_54 = arith.constant 0 : i32
    %91 = arith.cmpi ne, %90, %c0_i32_54 : i32
    scf.if %91 {
      %c0_55 = arith.constant 0 : index
      %c0_56 = arith.constant 0 : index
      %92 = vector.load %arg8[%c0_55, %c0_56] : memref<1x1xf32, #tpu.memory_space<vmem>>, vector<1x1xf32>
      %cst_57 = arith.constant 4.8828125E-4 : f32
      %93 = vector.broadcast %cst_57 : f32 to vector<1x1xf32>
      %94 = arith.mulf %92, %93 : vector<1x1xf32>
      %c0_58 = arith.constant 0 : index
      %c0_59 = arith.constant 0 : index
      %95 = vector.load %arg9[%c0_58, %c0_59] : memref<1x1xf32, #tpu.memory_space<vmem>>, vector<1x1xf32>
      %cst_60 = arith.constant 4.8828125E-4 : f32
      %96 = vector.broadcast %cst_60 : f32 to vector<1x1xf32>
      %97 = arith.mulf %95, %96 : vector<1x1xf32>
      %cst_61 = arith.constant 1.000000e+00 : f32
      %98 = vector.broadcast %cst_61 : f32 to vector<1x1xf32>
      %99 = arith.subf %98, %97 : vector<1x1xf32>
      %100 = arith.addf %94, %99 : vector<1x1xf32>
      %c0_62 = arith.constant 0 : index
      %c0_63 = arith.constant 0 : index
      %101 = vector.load %arg5[%c0_62, %c0_63] : memref<1x1xf32, #tpu.memory_space<vmem>>, vector<1x1xf32>
      tpu.vector_store %arg5[%c0_62, %c0_63], %100 {strides = array<i32>} : memref<1x1xf32, #tpu.memory_space<vmem>>, vector<1x1xf32>,
    } else {
    }
    return
  }
  func.func @transform_0(%arg0: i32) -> (i32, i32, i32) {
    %c0_i32 = arith.constant 0 : i32
    %c0_i32_0 = arith.constant 0 : i32
    %c0_i32_1 = arith.constant 0 : i32
    return %arg0, %c0_i32, %c0_i32_0 : i32, i32, i32
  }
  func.func @transform_1(%arg0: i32) -> (i32, i32, i32) {
    %c0_i32 = arith.constant 0 : i32
    %c0_i32_0 = arith.constant 0 : i32
    %c0_i32_1 = arith.constant 0 : i32
    return %arg0, %c0_i32, %c0_i32_0 : i32, i32, i32
  }
  func.func @transform_2(%arg0: i32) -> (i32, i32) {
    %c0_i32 = arith.constant 0 : i32
    %c0_i32_0 = arith.constant 0 : i32
    %c0_i32_1 = arith.constant 0 : i32
    return %c0_i32, %c0_i32_0 : i32, i32
  }
  func.func @transform_3(%arg0: i32) -> (i32, i32) {
    %c0_i32 = arith.constant 0 : i32
    %c0_i32_0 = arith.constant 0 : i32
    %c0_i32_1 = arith.constant 0 : i32
    return %c0_i32, %c0_i32_0 : i32, i32
  }
  func.func @transform_4(%arg0: i32) -> (i32, i32) {
    %c0_i32 = arith.constant 0 : i32
    %c0_i32_0 = arith.constant 0 : i32
    %c0_i32_1 = arith.constant 0 : i32
    return %c0_i32, %c0_i32_0 : i32, i32
  }
}

</mosaic_0001>

<llo_original>
// kernel: bce_ssim.1
$region0: #{bce_ssim.1}
  #allocation0 [shape = 'u32[]', space=smem, size = 0x4, offset = 0x4, fixed_abs, tag = 'smem constant byte address 0x4 - core index']
  #allocation1 [shape = 'u32[72,128]{1,0:T(1,128)}', space=vmem, size = 0x9000, scoped, tag = 'internal scratch']
  #allocation2 [shape = 'f32[80,16]{1,0:T(8,128)}', space=vmem, size = 0xa000, scoped, tag = 'scratch operand']
  #allocation3 [shape = 'f32[16,80]{1,0:T(8,128)}', space=vmem, size = 0x2000, scoped, tag = 'scratch operand']
  #allocation4 [shape = 'f32[1,1]{1,0:T(1,128)}', space=vmem, size = 0x200, scoped, tag = 'scratch operand']
  #allocation5 [shape = 'f32[1,1]{1,0:T(1,128)}', space=vmem, size = 0x200, scoped, tag = 'scratch operand']
  %s0 = inlined_call_operand.vmem [shape: f32[8,16,16], index: 0, kind: input, shape index: {}]
  %s1 = inlined_call_operand.vmem [shape: f32[8,16,16], index: 1, kind: input, shape index: {}]
  %s2 = inlined_call_operand.vmem [shape: f32[16,16], index: 2, kind: input, shape index: {}]
  %s3 = inlined_call_operand.vmem [shape: f32[16,16], index: 3, kind: input, shape index: {}]
  %s4 = inlined_call_operand.hbm [shape: f32[1,1], index: 4, kind: output, shape index: {}]
  %s5 = sld [smem:[#allocation0]]
  $region57: #{bce_ssim.1} parent=0
    _
  %s7 = ssub.s32 1, %s5
  %s8 = scalar_select 0, %s7, %s5
  $region1: #{bce_ssim.1} parent=0
    #allocation6 [shape = 'u8[512]{0}', space=vmem, size = 0x400, scoped, tag = 'output window, operand 0, single buffered']
    #allocation7 [shape = 's32[2]{0}', space=sflag, size = 0x8, scoped, tag = 'scoped memory for bce_ssim.1']
    %9 = vsyncpa [#allocation7], 0
    loop: start=0, step=1, limit=10
    $region2: #{bce_ssim.1} parent=1 // loop_pre_header
      _
    $region3: #{bce_ssim.1} parent=1 // loop_header
      %s11 = sphi 0, %s15
      %p12 = scmp.ge.s32.totalorder %s11, 10
      %s21 = sphi 0, %s23
      %s24 = sphi 0, %s21
      %s25 = sphi 0, %s24
      %s41 = sphi 0, %s25
      %s47 = sphi 0, %s49
      %s50 = sphi 0, %s47
      %s51 = sphi 0, %s50
      %s67 = sphi 0, %s51
      %s71 = sphi 0, %s71
      %s73 = sphi 0, %s71
      %s74 = sphi 0, %s73
      %s88 = sphi 0, %s74
      %s92 = sphi 0, %s92
      %s94 = sphi 0, %s92
      %s95 = sphi 0, %s94
      %s109 = sphi 0, %s95
      %s113 = sphi 0, %s113
      %s115 = sphi 0, %s113
      %s116 = sphi 0, %s115
      %s130 = sphi 0, %s116
    $region4: #{bce_ssim.1} parent=1 // loop_header_branch
      %14 = sbr.rel (%p12) target = $region8
    $region5: #{bce_ssim.1} parent=1 // loop_body
      %s16 = ssub.s32 %s11, 1
      %s17 = ssub.s32 %s11, 2
      %s18 = sadd.s32 %s11, 1
      %s19 = ssub.s32 %s11, %s18
      %p20 = scmp.eq.s32.totalorder %s19, 0
      %s22 = sadd.s32 %s21, 1
      %s23 = scalar_select %p20, %s21, %s22
      %p26 = pneg %p20
      %p27 = scmp.eq.s32.totalorder %s11, 7
      %p28 = por %p26, %p27
      %p29 = scmp.ne.s32.totalorder %s21, %s24
      %p30 = scmp.eq.s32.totalorder %s11, 0
      %p31 = por %p29, %p30
      %p32 = scmp.ne.s32.totalorder %s21, %s24
      %p33 = scmp.eq.s32.totalorder %s16, 7
      %p34 = por %p32, %p33
      %p35 = scmp.ne.s32.totalorder %s24, %s25
      %p36 = scmp.eq.s32.totalorder %s16, 0
      %p37 = por %p35, %p36
      %p38 = scmp.ne.s32.totalorder %s24, %s25
      %p39 = scmp.eq.s32.totalorder %s17, 7
      %p40 = por %p38, %p39
      %p42 = scmp.ne.s32.totalorder %s25, %s41
      %p43 = scmp.eq.s32.totalorder %s17, 0
      %p44 = por %p42, %p43
      %s45 = ssub.s32 %s11, %s18
      %p46 = scmp.eq.s32.totalorder %s45, 0
      %s48 = sadd.s32 %s47, 1
      %s49 = scalar_select %p46, %s47, %s48
      %p52 = pneg %p46
      %p53 = scmp.eq.s32.totalorder %s11, 7
      %p54 = por %p52, %p53
      %p55 = scmp.ne.s32.totalorder %s47, %s50
      %p56 = scmp.eq.s32.totalorder %s11, 0
      %p57 = por %p55, %p56
      %p58 = scmp.ne.s32.totalorder %s47, %s50
      %p59 = scmp.eq.s32.totalorder %s16, 7
      %p60 = por %p58, %p59
      %p61 = scmp.ne.s32.totalorder %s50, %s51
      %p62 = scmp.eq.s32.totalorder %s16, 0
      %p63 = por %p61, %p62
      %p64 = scmp.ne.s32.totalorder %s50, %s51
      %p65 = scmp.eq.s32.totalorder %s17, 7
      %p66 = por %p64, %p65
      %p68 = scmp.ne.s32.totalorder %s51, %s67
      %p69 = scmp.eq.s32.totalorder %s17, 0
      %p70 = por %p68, %p69
      %s72 = sadd.s32 %s71, 1
      %p75 = scmp.eq.s32.totalorder %s11, 7
      %p76 = scmp.ne.s32.totalorder %s71, %s73
      %p77 = scmp.eq.s32.totalorder %s11, 0
      %p78 = por %p76, %p77
      %p79 = scmp.ne.s32.totalorder %s71, %s73
      %p80 = scmp.eq.s32.totalorder %s16, 7
      %p81 = por %p79, %p80
      %p82 = scmp.ne.s32.totalorder %s73, %s74
      %p83 = scmp.eq.s32.totalorder %s16, 0
      %p84 = por %p82, %p83
      %p85 = scmp.ne.s32.totalorder %s73, %s74
      %p86 = scmp.eq.s32.totalorder %s17, 7
      %p87 = por %p85, %p86
      %p89 = scmp.ne.s32.totalorder %s74, %s88
      %p90 = scmp.eq.s32.totalorder %s17, 0
      %p91 = por %p89, %p90
      %s93 = sadd.s32 %s92, 1
      %p96 = scmp.eq.s32.totalorder %s11, 7
      %p97 = scmp.ne.s32.totalorder %s92, %s94
      %p98 = scmp.eq.s32.totalorder %s11, 0
      %p99 = por %p97, %p98
      %p100 = scmp.ne.s32.totalorder %s92, %s94
      %p101 = scmp.eq.s32.totalorder %s16, 7
      %p102 = por %p100, %p101
      %p103 = scmp.ne.s32.totalorder %s94, %s95
      %p104 = scmp.eq.s32.totalorder %s16, 0
      %p105 = por %p103, %p104
      %p106 = scmp.ne.s32.totalorder %s94, %s95
      %p107 = scmp.eq.s32.totalorder %s17, 7
      %p108 = por %p106, %p107
      %p110 = scmp.ne.s32.totalorder %s95, %s109
      %p111 = scmp.eq.s32.totalorder %s17, 0
      %p112 = por %p110, %p111
      %s114 = sadd.s32 %s113, 1
      %p117 = scmp.eq.s32.totalorder %s11, 7
      %p118 = scmp.ne.s32.totalorder %s113, %s115
      %p119 = scmp.eq.s32.totalorder %s11, 0
      %p120 = por %p118, %p119
      %p121 = scmp.ne.s32.totalorder %s113, %s115
      %p122 = scmp.eq.s32.totalorder %s16, 7
      %p123 = por %p121, %p122
      %p124 = scmp.ne.s32.totalorder %s115, %s116
      %p125 = scmp.eq.s32.totalorder %s16, 0
      %p126 = por %p124, %p125
      %p127 = scmp.ne.s32.totalorder %s115, %s116
      %p128 = scmp.eq.s32.totalorder %s17, 7
      %p129 = por %p127, %p128
      %p131 = scmp.ne.s32.totalorder %s116, %s130
      %p132 = scmp.eq.s32.totalorder %s17, 0
      %p133 = por %p131, %p132
      %p134 = scmp.le.s32.totalorder 1, %s11
      %p135 = scmp.lt.s32.totalorder %s11, 9
      %p136 = pnand %p134, %p135
      %p137 = pneg %p136
      // Predicated region
      $region9: #{bce_ssim.1} parent=5 // pred_check
        _
      $region10: #{bce_ssim.1} parent=5 // pred_check_branch
        %139 = sbr.rel (%p136) target = $region12
      $region11: #{bce_ssim.1} parent=5 // pred_region
        %s140 = ssub.s32 %s11, 1
        // Predicated region
        $region13: #{bce_ssim.1} parent=11 // pred_check
          %p141 = pneg %p84
        $region14: #{bce_ssim.1} parent=11 // pred_check_branch
          %143 = sbr.rel (%p141) target = $region16
        $region15: #{bce_ssim.1} parent=11 // pred_region
          _
        $region16: #{bce_ssim.1} parent=11 // pred_fallthru
          _
        // Predicated region
        $region17: #{bce_ssim.1} parent=11 // pred_check
          %p144 = pneg %p105
        $region18: #{bce_ssim.1} parent=11 // pred_check_branch
          %146 = sbr.rel (%p144) target = $region20
        $region19: #{bce_ssim.1} parent=11 // pred_region
          _
        $region20: #{bce_ssim.1} parent=11 // pred_fallthru
          _
      $region12: #{bce_ssim.1} parent=5 // pred_fallthru
        _
      %p147 = scmp.lt.s32.totalorder %s11, 8
      // Predicated region
      $region21: #{bce_ssim.1} parent=5 // pred_check
        %p148 = pneg %p147
      $region22: #{bce_ssim.1} parent=5 // pred_check_branch
        %150 = sbr.rel (%p148) target = $region24
      $region23: #{bce_ssim.1} parent=5 // pred_region
        // Predicated region
        $region25: #{bce_ssim.1} parent=23 // pred_check
          %p151 = pneg %p31
        $region26: #{bce_ssim.1} parent=23 // pred_check_branch
          %153 = sbr.rel (%p151) target = $region28
        $region27: #{bce_ssim.1} parent=23 // pred_region
          %p154 = scmp.lt.s32.totalorder %s11, 7
          %s155 = scalar_select %p154, %s11, 7
          %s156 = smul.addr %s155, 2
          %s157 = smul.addr %s156, 8
          %s158 = scalar_lea.vmem %s0, %s157
        $region28: #{bce_ssim.1} parent=23 // pred_fallthru
          _
        // Predicated region
        $region29: #{bce_ssim.1} parent=23 // pred_check
          %p159 = pneg %p57
        $region30: #{bce_ssim.1} parent=23 // pred_check_branch
          %161 = sbr.rel (%p159) target = $region32
        $region31: #{bce_ssim.1} parent=23 // pred_region
          %p162 = scmp.lt.s32.totalorder %s11, 7
          %s163 = scalar_select %p162, %s11, 7
          %s164 = smul.addr %s163, 2
          %s165 = smul.addr %s164, 8
          %s166 = scalar_lea.vmem %s1, %s165
        $region32: #{bce_ssim.1} parent=23 // pred_fallthru
          _
      $region24: #{bce_ssim.1} parent=5 // pred_fallthru
        _
      %p167 = scmp.le.s32.totalorder 1, %s11
      %p168 = scmp.lt.s32.totalorder %s11, 9
      %p169 = pnand %p167, %p168
      %p170 = pneg %p169
      // Predicated region
      $region33: #{bce_ssim.1} parent=5 // pred_check
        _
      $region34: #{bce_ssim.1} parent=5 // pred_check_branch
        %172 = sbr.rel (%p169) target = $region36
      $region35: #{bce_ssim.1} parent=5 // pred_region
        %s173 = ssub.s32 %s11, 1
        %p174 = scmp.lt.s32.totalorder %s16, 7
        %s175 = scalar_select %p174, %s16, 7
        %s176 = smul.addr %s175, 2
        %s177 = smul.addr %s176, 8
        %s178 = scalar_lea.vmem %s0, %s177
        %p179 = pneg %p37
        %p180 = pneg %p34
        %p181 = scmp.lt.s32.totalorder %s16, 7
        %s182 = scalar_select %p181, %s16, 7
        %s183 = smul.addr %s182, 2
        %s184 = smul.addr %s183, 8
        %s185 = scalar_lea.vmem %s1, %s184
        %p186 = pneg %p63
        %p187 = pneg %p60
        %p188 = pneg %p84
        %p189 = pneg %p81
        %p190 = pneg %p105
        %p191 = pneg %p102
        %p192 = pneg %p126
        %p193 = pneg %p123
        %p194 = scmp.lt.s32.totalorder %s16, 7
        %s195 = scalar_select %p194, %s16, 7
        %s196 = smul.addr %s195, 2
        %s197 = smul.addr %s196, 8
        %s198 = scalar_lea.vmem %s0, %s197
        %p199 = scmp.lt.s32.totalorder %s16, 7
        %s200 = scalar_select %p199, %s16, 7
        %s201 = smul.addr %s200, 2
        %s202 = smul.addr %s201, 8
        %s203 = scalar_lea.vmem %s1, %s202
        %p204 = scmp.eq.s32.totalorder %s16, 0
        // Predicated region
        $region37: #{bce_ssim.1} parent=35 // pred_check
          %p205 = pneg %p204
        $region38: #{bce_ssim.1} parent=35 // pred_check_branch
          %207 = sbr.rel (%p205) target = $region40
        $region39: #{bce_ssim.1} parent=35 // pred_region
          %vm208 = vcmask 0
          %209 = vst.msk [vmem:[#allocation4] sm:$0x1] %vm208, 0.0
          %210 = vst.msk [vmem:[#allocation5] sm:$0x1] %vm208, 0.0
        $region40: #{bce_ssim.1} parent=35 // pred_fallthru
          _
        %v211 = vld [vmem:[%s198] sm:$0xff]
        %v212 = vld [vmem:[%s198 + $0x8] sm:$0xff]
        %v213 = vld [vmem:[%s203] sm:$0xff]
        %v214 = vld [vmem:[%s203 + $0x8] sm:$0xff]
        %v215 = vlog2.pop %v211
        %v216 = vmul.f32 %v215, 0.6931472
        %v217 = vlog2.pop %v212
        %v218 = vmul.f32 %v217, 0.6931472
        %v219 = vmax.f32 %v216, -100.0
        %v220 = vmax.f32 %v218, -100.0
        %v221 = vsub.f32 1.0, %v211
        %v222 = vsub.f32 1.0, %v212
        %v223 = vlog2.pop %v221
        %v224 = vmul.f32 %v223, 0.6931472
        %v225 = vlog2.pop %v222
        %v226 = vmul.f32 %v225, 0.6931472
        %v227 = vmax.f32 %v224, -100.0
        %v228 = vmax.f32 %v226, -100.0
        %v229 = vld [vmem:[#allocation4] sm:$0x1]
        %v230 = vmul.f32 %v213, %v219
        %v231 = vmul.f32 %v214, %v220
        %v232 = vsub.f32 1.0, %v213
        %v233 = vsub.f32 1.0, %v214
        %v234 = vmul.f32 %v232, %v227
        %v235 = vmul.f32 %v233, %v228
        %v236 = vadd.f32 %v230, %v234
        %v237 = vadd.f32 %v231, %v235
        %v238 = vsub.f32 0.0, %v236
        %v239 = vsub.f32 0.0, %v237
        %vm240 = vcmask 130048
        %v241 = vsel %vm240, %v238, 0.0
        %242 = vadd.xlane.f32.xlu0 %v241
        %v243 = vpop.xlane.xlu0 %242
        %v244 = vsel %vm240, %v239, 0.0
        %245 = vadd.xlane.f32.xlu0 %v244
        %v246 = vpop.xlane.xlu0 %245
        %v247 = vadd.f32 %v243, %v246
        %v248 = vrot.slane %v247, 4
        %v249 = vadd.f32 %v247, %v248
        %v250 = vrot.slane %v249, 2
        %v251 = vadd.f32 %v249, %v250
        %v252 = vrot.slane %v251, 1
        %v253 = vadd.f32 %v251, %v252
        %v254 = vadd.f32 %v229, %v253
        %vm255 = vcmask 0
        %256 = vst.msk [vmem:[#allocation4] sm:$0x1] %vm255, %v254
        %257 = vst.msk [vmem:[#allocation2] sm:$0xff] %vm240, %v211
        %258 = vst.msk [vmem:[#allocation2 + $0x8] sm:$0xff] %vm240, %v212
        %259 = vst.msk [vmem:[#allocation2 + $0x10] sm:$0xff] %vm240, %v213
        %260 = vst.msk [vmem:[#allocation2 + $0x18] sm:$0xff] %vm240, %v214
        %v261 = vmul.f32 %v211, %v211
        %v262 = vmul.f32 %v212, %v212
        %263 = vst.msk [vmem:[#allocation2 + $0x20] sm:$0xff] %vm240, %v261
        %264 = vst.msk [vmem:[#allocation2 + $0x28] sm:$0xff] %vm240, %v262
        %v265 = vmul.f32 %v213, %v213
        %v266 = vmul.f32 %v214, %v214
        %267 = vst.msk [vmem:[#allocation2 + $0x30] sm:$0xff] %vm240, %v265
        %268 = vst.msk [vmem:[#allocation2 + $0x38] sm:$0xff] %vm240, %v266
        %v269 = vmul.f32 %v211, %v213
        %v270 = vmul.f32 %v212, %v214
        %271 = vst.msk [vmem:[#allocation2 + $0x40] sm:$0xff] %vm240, %v269
        %272 = vst.msk [vmem:[#allocation2 + $0x48] sm:$0xff] %vm240, %v270
        %v273 = vld [vmem:[#allocation2] sm:$0xff]
        %v274 = vld [vmem:[#allocation2 + $0x8] sm:$0xff]
        %v275 = vld [vmem:[#allocation2 + $0x10] sm:$0xff]
        %v276 = vld [vmem:[#allocation2 + $0x18] sm:$0xff]
        %v277 = vld [vmem:[#allocation2 + $0x20] sm:$0xff]
        %v278 = vld [vmem:[#allocation2 + $0x28] sm:$0xff]
        %v279 = vld [vmem:[#allocation2 + $0x30] sm:$0xff]
        %v280 = vld [vmem:[#allocation2 + $0x38] sm:$0xff]
        %v281 = vld [vmem:[#allocation2 + $0x40] sm:$0xff]
        %v282 = vld [vmem:[#allocation2 + $0x48] sm:$0xff]
        %v283 = vld [vmem:[%s3] sm:$0xff]
        %v284 = vld [vmem:[%s3 + $0x8] sm:$0xff]
        %v286 = vsel %vm240, %v273, 0
        %v289 = vsel %vm240, %v274, 0
        %v292 = vsel %vm240, %v275, 0
        %v295 = vsel %vm240, %v276, 0
        %v298 = vsel %vm240, %v277, 0
        %v301 = vsel %vm240, %v278, 0
        %v304 = vsel %vm240, %v279, 0
        %v307 = vsel %vm240, %v280, 0
        %v310 = vsel %vm240, %v281, 0
        %v313 = vsel %vm240, %v282, 0
        %315 = vmatpush.msra.mxu0 0.0
        %316 = vmatpush.msra.mxu0 0.0
        %317 = vmatpush.msra.mxu0 0.0
        %318 = vmatpush.msra.mxu0 0.0
        %319 = vmatpush.msra.mxu0 0.0
        %320 = vmatpush.msra.mxu0 0.0
        %321 = vmatpush.msra.mxu0 0.0
        %322 = vmatpush.msra.mxu0 0.0
        %323 = vmatpush.msra.mxu0 0.0
        %324 = vmatpush.msra.mxu0 0.0
        %325 = vmatpush.msra.mxu0 0.0
        %326 = vmatpush.msra.mxu0 0.0
        %327 = vmatpush.msra.mxu0 0.0
        %328 = vmatpush.msra.mxu0 0.0
        %329 = vmatpush.msra.mxu0 %v284
        %330 = vmatpush.msra.mxu0 %v283
        %331 = vmatmul.f32.gmra.mxu0 %v286
        %v332 = vpop.f32.mrf.mxu0
        %v333 = vadd.f32 0.0, %v332
        %334 = vmatmul.f32.gmra.mxu0 %v289
        %v335 = vpop.f32.mrf.mxu0
        %v336 = vadd.f32 0.0, %v335
        %337 = vmatmul.f32.gmra.mxu0 %v292
        %v338 = vpop.f32.mrf.mxu0
        %v339 = vadd.f32 0.0, %v338
        %340 = vmatmul.f32.gmra.mxu0 %v295
        %v341 = vpop.f32.mrf.mxu0
        %v342 = vadd.f32 0.0, %v341
        %343 = vmatmul.f32.gmra.mxu0 %v298
        %v344 = vpop.f32.mrf.mxu0
        %v345 = vadd.f32 0.0, %v344
        %346 = vmatmul.f32.gmra.mxu0 %v301
        %v347 = vpop.f32.mrf.mxu0
        %v348 = vadd.f32 0.0, %v347
        %349 = vmatmul.f32.gmra.mxu0 %v304
        %v350 = vpop.f32.mrf.mxu0
        %v351 = vadd.f32 0.0, %v350
        %352 = vmatmul.f32.gmra.mxu0 %v307
        %v353 = vpop.f32.mrf.mxu0
        %v354 = vadd.f32 0.0, %v353
        %355 = vmatmul.f32.gmra.mxu0 %v310
        %v356 = vpop.f32.mrf.mxu0
        %v357 = vadd.f32 0.0, %v356
        %358 = vmatmul.f32.gmra.mxu0 %v313
        %v359 = vpop.f32.mrf.mxu0
        %v360 = vadd.f32 0.0, %v359
        %361 = vdwg.mxu0
        %362 = vst.msk [vmem:[#allocation3] sm:$0xff] %vm240, %v333
        %363 = vst.msk [vmem:[#allocation3 + $0x8] sm:$0xff] %vm240, %v336
        %366 = vrot.lane.b32.xlu0 %v339, 16
        %v367 = vpop.permute.xlu0 %366
        %368 = vrot.lane.b32.xlu0 %v342, 16
        %v369 = vpop.permute.xlu0 %368
        %vm372 = vcmask 261248
        %373 = vst.msk [vmem:[#allocation3] sm:$0xff] %vm372, %v367
        %374 = vst.msk [vmem:[#allocation3 + $0x8] sm:$0xff] %vm372, %v369
        %377 = vrot.lane.b32.xlu0 %v345, 32
        %v378 = vpop.permute.xlu0 %377
        %379 = vrot.lane.b32.xlu0 %v348, 32
        %v380 = vpop.permute.xlu0 %379
        %vm383 = vcmask 392448
        %384 = vst.msk [vmem:[#allocation3] sm:$0xff] %vm383, %v378
        %385 = vst.msk [vmem:[#allocation3 + $0x8] sm:$0xff] %vm383, %v380
        %388 = vrot.lane.b32.xlu0 %v351, 48
        %v389 = vpop.permute.xlu0 %388
        %390 = vrot.lane.b32.xlu0 %v354, 48
        %v391 = vpop.permute.xlu0 %390
        %vm394 = vcmask 523648
        %395 = vst.msk [vmem:[#allocation3] sm:$0xff] %vm394, %v389
        %396 = vst.msk [vmem:[#allocation3 + $0x8] sm:$0xff] %vm394, %v391
        %399 = vrot.lane.b32.xlu0 %v357, 64
        %v400 = vpop.permute.xlu0 %399
        %401 = vrot.lane.b32.xlu0 %v360, 64
        %v402 = vpop.permute.xlu0 %401
        %vm405 = vcmask 654848
        %406 = vst.msk [vmem:[#allocation3] sm:$0xff] %vm405, %v400
        %407 = vst.msk [vmem:[#allocation3 + $0x8] sm:$0xff] %vm405, %v402
        %v408 = vld [vmem:[%s2] sm:$0xff]
        %v409 = vld [vmem:[%s2 + $0x8] sm:$0xff]
        %v410 = vld [vmem:[#allocation3] sm:$0xff]
        %v411 = vld [vmem:[#allocation3 + $0x8] sm:$0xff]
        %v413 = vsel %vm240, %v408, 0
        %v416 = vsel %vm240, %v409, 0
        %418 = vmatpush.msra.mxu0 0.0
        %419 = vmatpush.msra.mxu0 0.0
        %420 = vmatpush.msra.mxu0 0.0
        %421 = vmatpush.msra.mxu0 0.0
        %422 = vmatpush.msra.mxu0 0.0
        %423 = vmatpush.msra.mxu0 0.0
        %424 = vmatpush.msra.mxu0 0.0
        %425 = vmatpush.msra.mxu0 0.0
        %426 = vmatpush.msra.mxu0 0.0
        %427 = vmatpush.msra.mxu0 0.0
        %428 = vmatpush.msra.mxu0 0.0
        %429 = vmatpush.msra.mxu0 0.0
        %430 = vmatpush.msra.mxu0 0.0
        %431 = vmatpush.msra.mxu0 0.0
        %432 = vmatpush.msra.mxu0 %v411
        %433 = vmatpush.msra.mxu0 %v410
        %434 = vmatmul.f32.gmra.mxu0 %v413
        %v435 = vpop.f32.mrf.mxu0
        %v436 = vadd.f32 0.0, %v435
        %437 = vmatmul.f32.gmra.mxu0 %v416
        %v438 = vpop.f32.mrf.mxu0
        %v439 = vadd.f32 0.0, %v438
        %440 = vdwg.mxu0
        %v441 = vmul.f32 %v436, %v436
        %v442 = vmul.f32 %v439, %v439
        %445 = vrot.lane.b32.xlu0 %v436, 112
        %v446 = vpop.permute.xlu0 %445
        %447 = vrot.lane.b32.xlu0 %v439, 112
        %v448 = vpop.permute.xlu0 %447
        %v451 = vmul.f32 %v436, %v446
        %v452 = vmul.f32 %v439, %v448
        %455 = vrot.lane.b32.xlu0 %v441, 32
        %v456 = vpop.permute.xlu0 %455
        %457 = vrot.lane.b32.xlu0 %v442, 32
        %v458 = vpop.permute.xlu0 %457
        %v461 = vsub.f32 %v436, %v456
        %v462 = vsub.f32 %v439, %v458
        %465 = vrot.lane.b32.xlu0 %v451, 64
        %v466 = vpop.permute.xlu0 %465
        %467 = vrot.lane.b32.xlu0 %v452, 64
        %v468 = vpop.permute.xlu0 %467
        %v471 = vsub.f32 %v436, %v466
        %v472 = vsub.f32 %v439, %v468
        %v473 = vmul.f32 %v451, 2.0
        %v474 = vmul.f32 %v452, 2.0
        %v475 = vadd.f32 %v473, 0.0001
        %v476 = vadd.f32 %v474, 0.0001
        %v477 = vmul.f32 %v471, 2.0
        %v478 = vmul.f32 %v472, 2.0
        %v479 = vadd.f32 %v477, 0.0009
        %v480 = vadd.f32 %v478, 0.0009
        %483 = vrot.lane.b32.xlu0 %v479, 64
        %v484 = vpop.permute.xlu0 %483
        %485 = vrot.lane.b32.xlu0 %v480, 64
        %v486 = vpop.permute.xlu0 %485
        %v489 = vmul.f32 %v475, %v484
        %v490 = vmul.f32 %v476, %v486
        %491 = vrot.lane.b32.xlu0 %v441, 112
        %v492 = vpop.permute.xlu0 %491
        %493 = vrot.lane.b32.xlu0 %v442, 112
        %v494 = vpop.permute.xlu0 %493
        %v497 = vadd.f32 %v441, %v492
        %v498 = vadd.f32 %v442, %v494
        %v499 = vadd.f32 %v497, 0.0001
        %v500 = vadd.f32 %v498, 0.0001
        %503 = vrot.lane.b32.xlu0 %v461, 112
        %v504 = vpop.permute.xlu0 %503
        %505 = vrot.lane.b32.xlu0 %v462, 112
        %v506 = vpop.permute.xlu0 %505
        %v509 = vadd.f32 %v461, %v504
        %v510 = vadd.f32 %v462, %v506
        %v511 = vadd.f32 %v509, 0.0009
        %v512 = vadd.f32 %v510, 0.0009
        %515 = vrot.lane.b32.xlu0 %v511, 96
        %v516 = vpop.permute.xlu0 %515
        %517 = vrot.lane.b32.xlu0 %v512, 96
        %v518 = vpop.permute.xlu0 %517
        %v521 = vmul.f32 %v499, %v516
        %v522 = vmul.f32 %v500, %v518
        %v523 = vld [vmem:[#allocation5] sm:$0x1]
        %v524 = vrcp.pop %v521
        %v525 = vrcp.pop %v522
        %v526 = vmul.f32 %v489, %v524
        %v527 = vmul.f32 %v490, %v525
        %v528 = vsel %vm240, %v526, 0.0
        %529 = vadd.xlane.f32.xlu0 %v528
        %v530 = vpop.xlane.xlu0 %529
        %v531 = vsel %vm240, %v527, 0.0
        %532 = vadd.xlane.f32.xlu0 %v531
        %v533 = vpop.xlane.xlu0 %532
        %v534 = vadd.f32 %v530, %v533
        %v535 = vrot.slane %v534, 4
        %v536 = vadd.f32 %v534, %v535
        %v537 = vrot.slane %v536, 2
        %v538 = vadd.f32 %v536, %v537
        %v539 = vrot.slane %v538, 1
        %v540 = vadd.f32 %v538, %v539
        %v541 = vadd.f32 %v523, %v540
        %542 = vst.msk [vmem:[#allocation5] sm:$0x1] %vm255, %v541
        %p543 = scmp.eq.s32.totalorder %s16, 7
        // Predicated region
        $region41: #{bce_ssim.1} parent=35 // pred_check
          %p544 = pneg %p543
        $region42: #{bce_ssim.1} parent=35 // pred_check_branch
          %546 = sbr.rel (%p544) target = $region44
        $region43: #{bce_ssim.1} parent=35 // pred_region
          %v547 = vld [vmem:[#allocation4] sm:$0x1]
          %v548 = vmul.f32 %v547, 0.00048828125
          %v549 = vld [vmem:[#allocation5] sm:$0x1]
          %v550 = vmul.f32 %v549, 0.00048828125
          %v551 = vsub.f32 1.0, %v550
          %v552 = vadd.f32 %v548, %v551
          %553 = vst.msk [vmem:[#allocation6] sm:$0x1] %vm255, %v552
        $region44: #{bce_ssim.1} parent=35 // pred_fallthru
          _
        // Predicated region
        $region45: #{bce_ssim.1} parent=35 // pred_check
          %p554 = pneg %p123
        $region46: #{bce_ssim.1} parent=35 // pred_check_branch
          %556 = sbr.rel (%p554) target = $region48
        $region47: #{bce_ssim.1} parent=35 // pred_region
          %558 = vsyncadd [#allocation7], 0
          %s560 = sshll.u32 [#allocation6], 4
          %s561 = int_to_ptr.vmem [resolvable:$true] %s560
          %s562 = sshll.u32 %s4, 4
          %s563 = int_to_ptr.hbm [resolvable:$true] %s562
          %565 = dma.vmem_to_hbm [thread:$0]  %s561, 16, %s563, [#allocation7]
        $region48: #{bce_ssim.1} parent=35 // pred_fallthru
          _
        // Predicated region
        $region49: #{bce_ssim.1} parent=35 // pred_check
          %p566 = pneg %p123
        $region50: #{bce_ssim.1} parent=35 // pred_check_branch
          %568 = sbr.rel (%p566) target = $region52
        $region51: #{bce_ssim.1} parent=35 // pred_region
          %570 = dma.done [#allocation7], 16
        $region52: #{bce_ssim.1} parent=35 // pred_fallthru
          _
      $region36: #{bce_ssim.1} parent=5 // pred_fallthru
        _
      %p571 = scmp.le.s32.totalorder 2, %s11
      // Predicated region
      $region53: #{bce_ssim.1} parent=5 // pred_check
        %p572 = pneg %p571
      $region54: #{bce_ssim.1} parent=5 // pred_check_branch
        %574 = sbr.rel (%p572) target = $region56
      $region55: #{bce_ssim.1} parent=5 // pred_region
        %s575 = ssub.s32 %s11, 2
      $region56: #{bce_ssim.1} parent=5 // pred_fallthru
        _
    $region6: #{bce_ssim.1} parent=1 // loop_footer
      %s15 = sadd.s32 1, %s11
    $region7: #{bce_ssim.1} parent=1 // loop_footer_branch
      %10 = sbr.rel target = $region3
    $region8: #{bce_ssim.1} parent=1 // loop_exit
      _
    %576 = vsyncpa [#allocation7], 1
    %s577 = scalar_lea.sflag [#allocation7], 1
    %578 = vsyncpa %s577, 1

</llo_original>
